<compile_context>
chip_gen: v6e
topology: v6e:2x2x1
jax: 0.10.0
libtpu: 0.0.40
codegen_flags: <defaults>
</compile_context>

<pallas_src>
import functools

import jax
import jax.numpy as jnp
from jax.experimental import pallas as pl
from jax.experimental.pallas import tpu as pltpu


def _as_pair(v):
    if isinstance(v, (tuple, list)):
        return int(v[0]), int(v[1])
    return int(v), int(v)


def _round_up(a, b):
    return (a + b - 1) // b * b


def _sublane_multiple(itemsize):
    return {4: 8, 2: 16, 1: 32}.get(itemsize, 8)


# ---------------------------------------------------------------------------
# Kernels. Input block: (Bt, Ho_t, sh*Wc) where Wc = Wo*sw and the sh window
# rows of each output row are contiguous Wc-wide chunks on the lane axis.
# Output block: (Bt, Ho_t, Wo).
# ---------------------------------------------------------------------------

def _maxpool_kernel_strided(x_ref, o_ref, *, sh, sw, wc, wo):
    # sh*sw lane-strided loads folded with jnp.maximum -> (Bt, Ho_t, Wo) directly.
    z = None
    for i in range(sh):
        base = i * wc
        for j in range(sw):
            sl = pl.ds(base + j, wo) if sw == 1 else pl.ds(base + j, wo, stride=sw)
            v = x_ref[:, :, sl]
            z = v if z is None else jnp.maximum(z, v)
    o_ref[...] = z


def _maxpool_kernel_reshape(x_ref, o_ref, *, sh, sw, wc, wo):
    # Verified fallback: contiguous H-reduce, then reshape+reduce for W.
    x = x_ref[...]
    y = x[:, :, 0:wc]
    for i in range(1, sh):
        y = jnp.maximum(y, x[:, :, i * wc:(i + 1) * wc])
    if sw == 1:
        z = y
    else:
        bt, ho_t = y.shape[0], y.shape[1]
        z = jnp.max(y.reshape(bt, ho_t, wo, sw), axis=-1)
    o_ref[...] = z


# ---------------------------------------------------------------------------
# Block sizing
# ---------------------------------------------------------------------------

def _vmem_budget():
    cap = 128 * 1024 * 1024
    try:
        info = pltpu.get_tpu_info()
        cap = int(getattr(info, "vmem_capacity_bytes", cap))
    except Exception:
        pass
    budget = cap // 4                        # double-buffered 2x(in+out) blocks
    limit = min(3 * budget, (cap * 3) // 4)  # scoped-VMEM limit handed to Mosaic
    return budget, limit


def _block_geometry(n_planes, ho, wo, sh, wc, itemsize, budget, include_mid):
    """Pick (planes per step, output rows per step) fitting `budget` bytes."""
    sub = _sublane_multiple(itemsize)
    in_plane = _round_up(ho, sub) * _round_up(sh * wc, 128) * itemsize
    out_plane = _round_up(ho, sub) * _round_up(wo, 128) * itemsize
    per_plane = 2 * (in_plane + out_plane)            # double-buffered in + out
    if include_mid:   # reshape kernel's lane-sparse (..., wo, sw) relayout
        per_plane += ho * _round_up(wo, sub) * 128 * itemsize

    if per_plane <= budget:
        bt = max(1, budget // per_plane)
        return int(min(bt, n_planes)), ho

    # A single plane does not fit: tile the output-row (Ho) axis instead.
    in_row = _round_up(sh * wc, 128) * itemsize
    out_row = _round_up(wo, 128) * itemsize
    per_row = 2 * (in_row + out_row)
    if include_mid:
        per_row += _round_up(wo, sub) * 128 * itemsize
    rows = max(sub, (budget // max(per_row, 1)) // sub * sub)  # multiple of sublane packing
    return 1, int(min(rows, ho))


# ---------------------------------------------------------------------------
# Wrapper
# ---------------------------------------------------------------------------

def simple_max_pool(x, stride=(2, 2), padding=(0, 0)):
    """Equivalent of F.max_pool2d(x, kernel_size=stride, stride=stride, padding=padding)."""
    N, C, H, W = x.shape
    sh, sw = _as_pair(stride)
    ph, pw = _as_pair(padding)
    if 2 * ph > sh or 2 * pw > sw:
        raise ValueError("padding must be at most half of the kernel size")

    # Output sizes exactly as PyTorch computes them (floor mode).
    Ho = (H + 2 * ph - sh) // sh + 1
    Wo = (W + 2 * pw - sw) // sw + 1
    Wc = Wo * sw
    B = N * C
    itemsize = x.dtype.itemsize

    if ph == 0 and pw == 0 and H == Ho * sh and W == Wc:
        xv = x.reshape(B, Ho, sh * Wc)        # free, contiguous view; no extra HBM pass
    else:
        if jnp.issubdtype(x.dtype, jnp.floating):
            neg = -jnp.inf
        else:
            neg = jnp.iinfo(x.dtype).min
        xp = jnp.pad(x, ((0, 0), (0, 0), (ph, ph), (pw, pw)), constant_values=neg)
        xp = xp[:, :, : Ho * sh, :Wc]
        xv = xp.reshape(B, Ho, sh * Wc)

    budget, vmem_limit = _vmem_budget()
    cost = pl.CostEstimate(
        flops=int(B * Ho * Wo * max(sh * sw - 1, 1)),
        transcendentals=0,
        bytes_accessed=int((B * Ho * sh * Wc + B * Ho * Wo) * itemsize),
    )

    def run(kernel_fn, include_mid):
        bt, ho_t = _block_geometry(B, Ho, Wo, sh, Wc, itemsize, budget, include_mid)
        # Guarantee >=2 (up to 4) plane-axis grid steps so v7x's second
        # TensorCore gets work (negligible per-step overhead on v5e/v6e).
        min_steps = min(B, 4)
        if ho_t == Ho and min_steps > 1:
            bt = max(1, min(bt, pl.cdiv(B, min_steps)))
        grid = (pl.cdiv(B, bt), pl.cdiv(Ho, ho_t))
        out = pl.pallas_call(
            functools.partial(kernel_fn, sh=sh, sw=sw, wc=Wc, wo=Wo),
            out_shape=jax.ShapeDtypeStruct((B, Ho, Wo), x.dtype),
            grid=grid,
            in_specs=[pl.BlockSpec((bt, ho_t, sh * Wc), lambda b, h: (b, h, 0))],
            out_specs=pl.BlockSpec((bt, ho_t, Wo), lambda b, h: (b, h, 0)),
            compiler_params=pltpu.CompilerParams(
                dimension_semantics=("parallel", "parallel"),
                vmem_limit_bytes=int(vmem_limit)),
            cost_estimate=cost,
        )(xv)
        return jax.block_until_ready(out)

    try:
        out = run(_maxpool_kernel_strided, include_mid=False)
    except Exception:
        # Mosaic rejected the lane-strided load lowering on this generation;
        # fall back to the verified reshape+reduce kernel (its lane-padded
        # relayout is accounted for in the block-size model).
        out = run(_maxpool_kernel_reshape, include_mid=True)

    return out.reshape(N, C, Ho, Wo)


# ---------------------------------------------------------------------------
# Pure-JAX reference (lax.reduce_window) mirroring F.max_pool2d semantics.
# ---------------------------------------------------------------------------

def _reference_max_pool(x, stride=(2, 2), padding=(0, 0)):
    sh, sw = stride
    ph, pw = padding
    return jax.lax.reduce_window(
        x,
        -jnp.inf,
        jax.lax.max,
        window_dimensions=(1, 1, sh, sw),
        window_strides=(1, 1, sh, sw),
        padding=((0, 0), (0, 0), (ph, ph), (pw, pw)),
    )


if __name__ == "__main__":
    key = jax.random.PRNGKey(0)
    k1, k2 = jax.random.split(key)

    # Fast path: exact-multiple spatial dims, no padding.
    x = jax.random.normal(k1, (2, 4, 16, 16), dtype=jnp.float32)
    out = simple_max_pool(x, stride=(2, 2), padding=(0, 0))
    out = jax.block_until_ready(out)
    ref = _reference_max_pool(x, stride=(2, 2), padding=(0, 0))
    assert out.shape == (2, 4, 8, 8), out.shape
    assert jnp.allclose(out, ref), "mismatch vs reference max_pool2d (no padding)"

    # Padded / non-multiple spatial path.
    x2 = jax.random.normal(k2, (1, 3, 7, 9), dtype=jnp.float32)
    out2 = simple_max_pool(x2, stride=(2, 2), padding=(1, 1))
    out2 = jax.block_until_ready(out2)
    ref2 = _reference_max_pool(x2, stride=(2, 2), padding=(1, 1))
    assert out2.shape == (1, 3, 4, 5), out2.shape
    assert jnp.allclose(out2, ref2), "mismatch vs reference max_pool2d (padding)"

    print("KERNEL_OK")
</pallas_src>

<mosaic_0001>
module attributes {stable_mosaic.version = 11 : i64} {
  func.func @_maxpool_kernel_strided(%arg0: i32, %arg1: i32, %arg2: memref<2x8x32xf32, #tpu.memory_space<vmem>>, %arg3: memref<2x8x8xf32, #tpu.memory_space<vmem>>) attributes {dimension_semantics = [#tpu.dimension_semantics<parallel>, #tpu.dimension_semantics<parallel>], iteration_bounds = array<i64: 4, 1>, scalar_prefetch = 0 : i64, scratch_operands = 0 : i64, tpu.core_type = #tpu.core_type<tc>, window_params = [{transform_indices = @transform_0, window_bounds = array<i64: 2, 8, 32>}, {transform_indices = @transform_1, window_bounds = array<i64: 2, 8, 8>}]} {
    %c0 = arith.constant 0 : index
    %c0_0 = arith.constant 0 : index
    %c0_1 = arith.constant 0 : index
    %0 = tpu.strided_load %arg2[%c0, %c0_0, %c0_1] {strides = array<i32: 1, 1, 2>} : memref<2x8x32xf32, #tpu.memory_space<vmem>>, vector<2x8x8xf32>
    %c0_2 = arith.constant 0 : index
    %c0_3 = arith.constant 0 : index
    %c1 = arith.constant 1 : index
    %1 = tpu.strided_load %arg2[%c0_2, %c0_3, %c1] {strides = array<i32: 1, 1, 2>} : memref<2x8x32xf32, #tpu.memory_space<vmem>>, vector<2x8x8xf32>
    %2 = arith.maximumf %0, %1 : vector<2x8x8xf32>
    %c0_4 = arith.constant 0 : index
    %c0_5 = arith.constant 0 : index
    %c16 = arith.constant 16 : index
    %3 = tpu.strided_load %arg2[%c0_4, %c0_5, %c16] {strides = array<i32: 1, 1, 2>} : memref<2x8x32xf32, #tpu.memory_space<vmem>>, vector<2x8x8xf32>
    %4 = arith.maximumf %2, %3 : vector<2x8x8xf32>
    %c0_6 = arith.constant 0 : index
    %c0_7 = arith.constant 0 : index
    %c17 = arith.constant 17 : index
    %5 = tpu.strided_load %arg2[%c0_6, %c0_7, %c17] {strides = array<i32: 1, 1, 2>} : memref<2x8x32xf32, #tpu.memory_space<vmem>>, vector<2x8x8xf32>
    %6 = arith.maximumf %4, %5 : vector<2x8x8xf32>
    %c0_8 = arith.constant 0 : index
    %c0_9 = arith.constant 0 : index
    %c0_10 = arith.constant 0 : index
    %7 = vector.load %arg3[%c0_8, %c0_9, %c0_10] : memref<2x8x8xf32, #tpu.memory_space<vmem>>, vector<2x8x8xf32>
    tpu.vector_store %arg3[%c0_8, %c0_9, %c0_10], %6 {strides = array<i32>} : memref<2x8x8xf32, #tpu.memory_space<vmem>>, vector<2x8x8xf32>,
    return
  }
  func.func @transform_0(%arg0: i32, %arg1: i32) -> (i32, i32, i32) {
    %c0_i32 = arith.constant 0 : i32
    %c0_i32_0 = arith.constant 0 : i32
    return %arg0, %arg1, %c0_i32 : i32, i32, i32
  }
  func.func @transform_1(%arg0: i32, %arg1: i32) -> (i32, i32, i32) {
    %c0_i32 = arith.constant 0 : i32
    %c0_i32_0 = arith.constant 0 : i32
    return %arg0, %arg1, %c0_i32 : i32, i32, i32
  }
}

module attributes {stable_mosaic.version = 11 : i64} {
  func.func @_maxpool_kernel_reshape(%arg0: i32, %arg1: i32, %arg2: memref<2x8x32xf32, #tpu.memory_space<vmem>>, %arg3: memref<2x8x8xf32, #tpu.memory_space<vmem>>) attributes {dimension_semantics = [#tpu.dimension_semantics<parallel>, #tpu.dimension_semantics<parallel>], iteration_bounds = array<i64: 4, 1>, scalar_prefetch = 0 : i64, scratch_operands = 0 : i64, tpu.core_type = #tpu.core_type<tc>, window_params = [{transform_indices = @transform_0, window_bounds = array<i64: 2, 8, 32>}, {transform_indices = @transform_1, window_bounds = array<i64: 2, 8, 8>}]} {
    %c0 = arith.constant 0 : index
    %c0_0 = arith.constant 0 : index
    %c0_1 = arith.constant 0 : index
    %0 = vector.load %arg2[%c0, %c0_0, %c0_1] : memref<2x8x32xf32, #tpu.memory_space<vmem>>, vector<2x8x32xf32>
    %1 = vector.extract_strided_slice %0 {offsets = [0, 0, 0], sizes = [2, 8, 16], strides = [1, 1, 1]} : vector<2x8x32xf32> to vector<2x8x16xf32>
    %2 = vector.extract_strided_slice %0 {offsets = [0, 0, 16], sizes = [2, 8, 16], strides = [1, 1, 1]} : vector<2x8x32xf32> to vector<2x8x16xf32>
    %3 = arith.maximumf %1, %2 : vector<2x8x16xf32>
    %4 = vector.shape_cast %3 : vector<2x8x16xf32> to vector<2x8x8x2xf32>
    %cst = arith.constant dense<0xFF800000> : vector<2x8x8xf32>
    %5 = vector.multi_reduction <maximumf>, %4, %cst [3] : vector<2x8x8x2xf32> to vector<2x8x8xf32>
    %c0_2 = arith.constant 0 : index
    %c0_3 = arith.constant 0 : index
    %c0_4 = arith.constant 0 : index
    %6 = vector.load %arg3[%c0_2, %c0_3, %c0_4] : memref<2x8x8xf32, #tpu.memory_space<vmem>>, vector<2x8x8xf32>
    tpu.vector_store %arg3[%c0_2, %c0_3, %c0_4], %5 {strides = array<i32>} : memref<2x8x8xf32, #tpu.memory_space<vmem>>, vector<2x8x8xf32>,
    return
  }
  func.func @transform_0(%arg0: i32, %arg1: i32) -> (i32, i32, i32) {
    %c0_i32 = arith.constant 0 : i32
    %c0_i32_0 = arith.constant 0 : i32
    return %arg0, %arg1, %c0_i32 : i32, i32, i32
  }
  func.func @transform_1(%arg0: i32, %arg1: i32) -> (i32, i32, i32) {
    %c0_i32 = arith.constant 0 : i32
    %c0_i32_0 = arith.constant 0 : i32
    return %arg0, %arg1, %c0_i32 : i32, i32, i32
  }
}

</mosaic_0001>

<llo_original>
// kernel: tpu_custom_call.1
$region0: #{tpu_custom_call.1}
  #allocation0 [shape = 'u32[]', space=smem, size = 0x4, offset = 0x4, fixed_abs, tag = 'smem constant byte address 0x4 - core index']
  #allocation1 [shape = 'u32[144,128]{1,0:T(1,128)}', space=vmem, size = 0x12000, scoped, tag = 'internal scratch']
  %s0 = inlined_call_operand.hbm [shape: f32[8,8,32], index: 0, kind: input, shape index: {}]
  %s1 = inlined_call_operand.hbm [shape: f32[8,8,8], index: 1, kind: output, shape index: {}]
  %s2 = sld [smem:[#allocation0]]
  $region41: #{tpu_custom_call.1} parent=0
    _
  %s4 = ssub.s32 1, %s2
  %s5 = scalar_select 0, %s4, %s2
  $region1: #{tpu_custom_call.1} parent=0
    #allocation2 [shape = 'u8[16384]{0}', space=vmem, size = 0x4000, scoped, tag = 'input window, operand 0']
    #allocation3 [shape = 's32[2]{0}', space=sflag, size = 0x8, scoped, tag = 'scoped memory for tpu_custom_call.1']
    #allocation4 [shape = 's32[2]{0}', space=sflag, size = 0x8, scoped, tag = 'scoped memory for tpu_custom_call.1']
    #allocation5 [shape = 'u8[16384]{0}', space=vmem, size = 0x4000, scoped, tag = 'output window, operand 0']
    %6 = vsyncpa [#allocation3], 0
    %s7 = scalar_lea.sflag [#allocation3], 1
    %8 = vsyncpa %s7, 0
    %9 = vsyncpa [#allocation4], 0
    %s10 = scalar_lea.sflag [#allocation4], 1
    %11 = vsyncpa %s10, 0
    loop: start=0, step=1, limit=6
    $region2: #{tpu_custom_call.1} parent=1 // loop_pre_header
      _
    $region3: #{tpu_custom_call.1} parent=1 // loop_header
      %s13 = sphi 0, %s17
      %p14 = scmp.ge.s32.totalorder %s13, 6
      %s20 = sphi 0, %s32
      %s21 = sphi 0, %s28
      %s22 = sphi 0, %s20
      %s23 = sphi 0, %s21
      %s24 = sphi 0, %s22
      %s25 = sphi 0, %s23
      %s37 = sphi 0, %s39
      %s40 = sphi 0, %s37
      %s41 = sphi 0, %s40
      %s57 = sphi 0, %s41
      %s65 = sphi 0, %s67
      %s68 = sphi 0, %s65
      %s69 = sphi 0, %s68
      %s85 = sphi 0, %s69
    $region4: #{tpu_custom_call.1} parent=1 // loop_header_branch
      %16 = sbr.rel (%p14) target = $region8
    $region5: #{tpu_custom_call.1} parent=1 // loop_body
      %s18 = ssub.s32 %s13, 1
      %s19 = ssub.s32 %s13, 2
      %s26 = sadd.s32 1, %s21
      %p27 = scmp.ge.s32.totalorder %s26, 1
      %s28 = scalar_select %p27, 0, %s26
      %s29 = sadd.s32 1, %s20
      %s30 = scalar_select %p27, %s29, %s20
      %p31 = scmp.ge.s32.totalorder %s30, 4
      %s32 = scalar_select %p31, 0, %s30
      %s33 = ssub.s32 %s20, %s32
      %s34 = ssub.s32 %s21, %s28
      %s35 = sor.u32 %s33, %s34
      %p36 = scmp.eq.s32.totalorder %s35, 0
      %s38 = sadd.s32 %s37, 1
      %s39 = scalar_select %p36, %s37, %s38
      %p42 = pneg %p36
      %p43 = scmp.eq.s32.totalorder %s13, 3
      %p44 = por %p42, %p43
      %p45 = scmp.ne.s32.totalorder %s37, %s40
      %p46 = scmp.eq.s32.totalorder %s13, 0
      %p47 = por %p45, %p46
      %p48 = scmp.ne.s32.totalorder %s37, %s40
      %p49 = scmp.eq.s32.totalorder %s18, 3
      %p50 = por %p48, %p49
      %p51 = scmp.ne.s32.totalorder %s40, %s41
      %p52 = scmp.eq.s32.totalorder %s18, 0
      %p53 = por %p51, %p52
      %p54 = scmp.ne.s32.totalorder %s40, %s41
      %p55 = scmp.eq.s32.totalorder %s19, 3
      %p56 = por %p54, %p55
      %p58 = scmp.ne.s32.totalorder %s41, %s57
      %p59 = scmp.eq.s32.totalorder %s19, 0
      %p60 = por %p58, %p59
      %s61 = ssub.s32 %s20, %s32
      %s62 = ssub.s32 %s21, %s28
      %s63 = sor.u32 %s61, %s62
      %p64 = scmp.eq.s32.totalorder %s63, 0
      %s66 = sadd.s32 %s65, 1
      %s67 = scalar_select %p64, %s65, %s66
      %p70 = pneg %p64
      %p71 = scmp.eq.s32.totalorder %s13, 3
      %p72 = por %p70, %p71
      %p73 = scmp.ne.s32.totalorder %s65, %s68
      %p74 = scmp.eq.s32.totalorder %s13, 0
      %p75 = por %p73, %p74
      %p76 = scmp.ne.s32.totalorder %s65, %s68
      %p77 = scmp.eq.s32.totalorder %s18, 3
      %p78 = por %p76, %p77
      %p79 = scmp.ne.s32.totalorder %s68, %s69
      %p80 = scmp.eq.s32.totalorder %s18, 0
      %p81 = por %p79, %p80
      %p82 = scmp.ne.s32.totalorder %s68, %s69
      %p83 = scmp.eq.s32.totalorder %s19, 3
      %p84 = por %p82, %p83
      %p86 = scmp.ne.s32.totalorder %s69, %s85
      %p87 = scmp.eq.s32.totalorder %s19, 0
      %p88 = por %p86, %p87
      %p89 = scmp.le.s32.totalorder 1, %s13
      %p90 = scmp.lt.s32.totalorder %s13, 5
      %p91 = pnand %p89, %p90
      %p92 = pneg %p91
      // Predicated region
      $region9: #{tpu_custom_call.1} parent=5 // pred_check
        _
      $region10: #{tpu_custom_call.1} parent=5 // pred_check_branch
        %94 = sbr.rel (%p91) target = $region12
      $region11: #{tpu_custom_call.1} parent=5 // pred_region
        %s95 = ssub.s32 %s13, 1
      $region12: #{tpu_custom_call.1} parent=5 // pred_fallthru
        _
      %p96 = scmp.lt.s32.totalorder %s13, 4
      // Predicated region
      $region13: #{tpu_custom_call.1} parent=5 // pred_check
        %p97 = pneg %p96
      $region14: #{tpu_custom_call.1} parent=5 // pred_check_branch
        %99 = sbr.rel (%p97) target = $region16
      $region15: #{tpu_custom_call.1} parent=5 // pred_region
        // Predicated region
        $region17: #{tpu_custom_call.1} parent=15 // pred_check
          %p100 = pneg %p47
        $region18: #{tpu_custom_call.1} parent=15 // pred_check_branch
          %102 = sbr.rel (%p100) target = $region20
        $region19: #{tpu_custom_call.1} parent=15 // pred_region
          %s103 = sand.u32 %s37, 1
          %s104 = scalar_lea.sflag [#allocation3], %s103
          %s105 = sand.u32 %s37, 1
          %s106 = smul.addr %s105, 16
          %s107 = scalar_lea.vmem [#allocation2], %s106
          %s108 = smul.u32 2, %s20
          %s110 = ssub.s32 256, 256
          %111 = vsyncadd %s104, %s110
          %s112 = sadd.s32 %s21, %s108
          %s113 = smul.addr %s112, 128
          %s114 = scalar_lea.hbm %s0, %s113
          %s115 = sshll.u32 %s107, 4
          %s116 = int_to_ptr.vmem [resolvable:$true] %s115
          %121 = dma.hbm_to_vmem [thread:$0]  %s114, 256, %s116, %s104, 128, 128, 8
        $region20: #{tpu_custom_call.1} parent=15 // pred_fallthru
          _
      $region16: #{tpu_custom_call.1} parent=5 // pred_fallthru
        _
      %p122 = scmp.le.s32.totalorder 1, %s13
      %p123 = scmp.lt.s32.totalorder %s13, 5
      %p124 = pnand %p122, %p123
      %p125 = pneg %p124
      // Predicated region
      $region21: #{tpu_custom_call.1} parent=5 // pred_check
        _
      $region22: #{tpu_custom_call.1} parent=5 // pred_check_branch
        %127 = sbr.rel (%p124) target = $region24
      $region23: #{tpu_custom_call.1} parent=5 // pred_region
        %s128 = ssub.s32 %s13, 1
        %s129 = sand.u32 %s40, 1
        %s130 = scalar_lea.sflag [#allocation3], %s129
        %s131 = sand.u32 %s40, 1
        %s132 = smul.addr %s131, 16
        %s133 = scalar_lea.vmem [#allocation2], %s132
        // Predicated region
        $region25: #{tpu_custom_call.1} parent=23 // pred_check
          %p134 = pneg %p53
        $region26: #{tpu_custom_call.1} parent=23 // pred_check_branch
          %136 = sbr.rel (%p134) target = $region28
        $region27: #{tpu_custom_call.1} parent=23 // pred_region
          %137 = dma.done %s130, 256
        $region28: #{tpu_custom_call.1} parent=23 // pred_fallthru
          _
        %s138 = sand.u32 %s40, 1
        %s139 = scalar_lea.sflag [#allocation3], %s138
        %s140 = sand.u32 %s40, 1
        %s141 = smul.addr %s140, 16
        %s142 = scalar_lea.vmem [#allocation2], %s141
        %p143 = pneg %p53
        %p144 = pneg %p50
        %p145 = pneg %p81
        %p146 = pneg %p78
        %s147 = sand.u32 %s68, 1
        %s148 = scalar_lea.sflag [#allocation4], %s147
        %s149 = sand.u32 %s68, 1
        %s150 = smul.addr %s149, 16
        %s151 = scalar_lea.vmem [#allocation5], %s150
        %s152 = smul.u32 2, %s22
        %s153 = smul.u32 2, %s22
        %v154 = vld [vmem:[%s133] sm:$0xff]
        %v155 = vld [vmem:[%s133 + $0x8] sm:$0xff]
        %158 = vrot.lane.b32.xlu0 %v154, 112
        %v159 = vpop.permute.xlu0 %158
        %160 = vrot.lane.b32.xlu0 %v155, 112
        %v161 = vpop.permute.xlu0 %160
        %v164 = vmax.f32 %v154, %v159
        %v165 = vmax.f32 %v155, %v161
        %168 = vrot.lane.b32.xlu0 %v164, 126
        %v169 = vpop.permute.xlu0 %168
        %170 = vrot.lane.b32.xlu0 %v165, 126
        %v171 = vpop.permute.xlu0 %170
        %174 = vrot.lane.b32.xlu0 %v164, 124
        %v175 = vpop.permute.xlu0 %174
        %176 = vrot.lane.b32.xlu0 %v165, 124
        %v177 = vpop.permute.xlu0 %176
        %180 = vrot.lane.b32.xlu0 %v164, 122
        %v181 = vpop.permute.xlu0 %180
        %182 = vrot.lane.b32.xlu0 %v165, 122
        %v183 = vpop.permute.xlu0 %182
        %186 = vrot.lane.b32.xlu0 %v164, 120
        %v187 = vpop.permute.xlu0 %186
        %188 = vrot.lane.b32.xlu0 %v165, 120
        %v189 = vpop.permute.xlu0 %188
        %192 = vrot.lane.b32.xlu0 %v164, 118
        %v193 = vpop.permute.xlu0 %192
        %194 = vrot.lane.b32.xlu0 %v165, 118
        %v195 = vpop.permute.xlu0 %194
        %198 = vrot.lane.b32.xlu0 %v164, 116
        %v199 = vpop.permute.xlu0 %198
        %200 = vrot.lane.b32.xlu0 %v165, 116
        %v201 = vpop.permute.xlu0 %200
        %204 = vrot.lane.b32.xlu0 %v164, 114
        %v205 = vpop.permute.xlu0 %204
        %206 = vrot.lane.b32.xlu0 %v165, 114
        %v207 = vpop.permute.xlu0 %206
        %v210 = vcombine.low %v164, %v175
        %v211 = vcombine.high %v164, %v175
        %v213 = vunpack.c.l.s4 1983009808
        %v214 = vunpack.c.0.s8 %v213
        %v215 = vlaneseq
        %v216 = vshrl.u32 %v215, 7
        %v217 = vsub.s32 %v214, %v216
        %v218 = vrot.slane %v210, %v217
        %v220 = vunpack.c.l.s4 1983009808
        %v221 = vunpack.c.0.s8 %v220
        %v222 = vlaneseq
        %v223 = vshrl.u32 %v222, 7
        %v224 = vsub.s32 %v221, %v223
        %v225 = vrot.slane %v211, %v224
        %v226 = vcombine.low %v169, %v181
        %v227 = vcombine.high %v169, %v181
        %v229 = vunpack.c.l.s4 1983009808
        %v230 = vunpack.c.0.s8 %v229
        %v231 = vlaneseq
        %v232 = vshrl.u32 %v231, 7
        %v233 = vsub.s32 %v230, %v232
        %v234 = vrot.slane %v226, %v233
        %v236 = vunpack.c.l.s4 1983009808
        %v237 = vunpack.c.0.s8 %v236
        %v238 = vlaneseq
        %v239 = vshrl.u32 %v238, 7
        %v240 = vsub.s32 %v237, %v239
        %v241 = vrot.slane %v227, %v240
        %v242 = vcombine.low %v187, %v199
        %v243 = vcombine.high %v187, %v199
        %v245 = vunpack.c.l.s4 1983009808
        %v246 = vunpack.c.0.s8 %v245
        %v247 = vlaneseq
        %v248 = vshrl.u32 %v247, 7
        %v249 = vsub.s32 %v246, %v248
        %v250 = vrot.slane %v242, %v249
        %v252 = vunpack.c.l.s4 1983009808
        %v253 = vunpack.c.0.s8 %v252
        %v254 = vlaneseq
        %v255 = vshrl.u32 %v254, 7
        %v256 = vsub.s32 %v253, %v255
        %v257 = vrot.slane %v243, %v256
        %v258 = vcombine.low %v193, %v205
        %v259 = vcombine.high %v193, %v205
        %v261 = vunpack.c.l.s4 1983009808
        %v262 = vunpack.c.0.s8 %v261
        %v263 = vlaneseq
        %v264 = vshrl.u32 %v263, 7
        %v265 = vsub.s32 %v262, %v264
        %v266 = vrot.slane %v258, %v265
        %v268 = vunpack.c.l.s4 1983009808
        %v269 = vunpack.c.0.s8 %v268
        %v270 = vlaneseq
        %v271 = vshrl.u32 %v270, 7
        %v272 = vsub.s32 %v269, %v271
        %v273 = vrot.slane %v259, %v272
        %v274 = vcombine.low %v218, %v234
        %v275 = vcombine.high %v218, %v234
        %v277 = vunpack.c.l.s4 1934713408
        %v278 = vunpack.c.0.s8 %v277
        %v279 = vlaneseq
        %v280 = vshrl.u32 %v279, 7
        %v281 = vsub.s32 %v278, %v280
        %v282 = vrot.slane %v274, %v281
        %v284 = vunpack.c.l.s4 1934713408
        %v285 = vunpack.c.0.s8 %v284
        %v286 = vlaneseq
        %v287 = vshrl.u32 %v286, 7
        %v288 = vsub.s32 %v285, %v287
        %v289 = vrot.slane %v275, %v288
        %v290 = vcombine.low %v225, %v241
        %v291 = vcombine.high %v225, %v241
        %v293 = vunpack.c.l.s4 1934713408
        %v294 = vunpack.c.0.s8 %v293
        %v295 = vlaneseq
        %v296 = vshrl.u32 %v295, 7
        %v297 = vsub.s32 %v294, %v296
        %v298 = vrot.slane %v290, %v297
        %v300 = vunpack.c.l.s4 1934713408
        %v301 = vunpack.c.0.s8 %v300
        %v302 = vlaneseq
        %v303 = vshrl.u32 %v302, 7
        %v304 = vsub.s32 %v301, %v303
        %v305 = vrot.slane %v291, %v304
        %v306 = vcombine.low %v250, %v266
        %v307 = vcombine.high %v250, %v266
        %v309 = vunpack.c.l.s4 1934713408
        %v310 = vunpack.c.0.s8 %v309
        %v311 = vlaneseq
        %v312 = vshrl.u32 %v311, 7
        %v313 = vsub.s32 %v310, %v312
        %v314 = vrot.slane %v306, %v313
        %v316 = vunpack.c.l.s4 1934713408
        %v317 = vunpack.c.0.s8 %v316
        %v318 = vlaneseq
        %v319 = vshrl.u32 %v318, 7
        %v320 = vsub.s32 %v317, %v319
        %v321 = vrot.slane %v307, %v320
        %v322 = vcombine.low %v257, %v273
        %v323 = vcombine.high %v257, %v273
        %v325 = vunpack.c.l.s4 1934713408
        %v326 = vunpack.c.0.s8 %v325
        %v327 = vlaneseq
        %v328 = vshrl.u32 %v327, 7
        %v329 = vsub.s32 %v326, %v328
        %v330 = vrot.slane %v322, %v329
        %v332 = vunpack.c.l.s4 1934713408
        %v333 = vunpack.c.0.s8 %v332
        %v334 = vlaneseq
        %v335 = vshrl.u32 %v334, 7
        %v336 = vsub.s32 %v333, %v335
        %v337 = vrot.slane %v323, %v336
        %v338 = vcombine.low %v282, %v314
        %v339 = vcombine.high %v282, %v314
        %v340 = vcombine.low %v289, %v321
        %v341 = vcombine.high %v289, %v321
        %v342 = vcombine.low %v298, %v330
        %v343 = vcombine.high %v298, %v330
        %v344 = vcombine.low %v305, %v337
        %v345 = vcombine.high %v305, %v337
        %v346 = vcombine.low %v165, %v177
        %v347 = vcombine.high %v165, %v177
        %v349 = vunpack.c.l.s4 1983009808
        %v350 = vunpack.c.0.s8 %v349
        %v351 = vlaneseq
        %v352 = vshrl.u32 %v351, 7
        %v353 = vsub.s32 %v350, %v352
        %v354 = vrot.slane %v346, %v353
        %v356 = vunpack.c.l.s4 1983009808
        %v357 = vunpack.c.0.s8 %v356
        %v358 = vlaneseq
        %v359 = vshrl.u32 %v358, 7
        %v360 = vsub.s32 %v357, %v359
        %v361 = vrot.slane %v347, %v360
        %v362 = vcombine.low %v171, %v183
        %v363 = vcombine.high %v171, %v183
        %v365 = vunpack.c.l.s4 1983009808
        %v366 = vunpack.c.0.s8 %v365
        %v367 = vlaneseq
        %v368 = vshrl.u32 %v367, 7
        %v369 = vsub.s32 %v366, %v368
        %v370 = vrot.slane %v362, %v369
        %v372 = vunpack.c.l.s4 1983009808
        %v373 = vunpack.c.0.s8 %v372
        %v374 = vlaneseq
        %v375 = vshrl.u32 %v374, 7
        %v376 = vsub.s32 %v373, %v375
        %v377 = vrot.slane %v363, %v376
        %v378 = vcombine.low %v189, %v201
        %v379 = vcombine.high %v189, %v201
        %v381 = vunpack.c.l.s4 1983009808
        %v382 = vunpack.c.0.s8 %v381
        %v383 = vlaneseq
        %v384 = vshrl.u32 %v383, 7
        %v385 = vsub.s32 %v382, %v384
        %v386 = vrot.slane %v378, %v385
        %v388 = vunpack.c.l.s4 1983009808
        %v389 = vunpack.c.0.s8 %v388
        %v390 = vlaneseq
        %v391 = vshrl.u32 %v390, 7
        %v392 = vsub.s32 %v389, %v391
        %v393 = vrot.slane %v379, %v392
        %v394 = vcombine.low %v195, %v207
        %v395 = vcombine.high %v195, %v207
        %v397 = vunpack.c.l.s4 1983009808
        %v398 = vunpack.c.0.s8 %v397
        %v399 = vlaneseq
        %v400 = vshrl.u32 %v399, 7
        %v401 = vsub.s32 %v398, %v400
        %v402 = vrot.slane %v394, %v401
        %v404 = vunpack.c.l.s4 1983009808
        %v405 = vunpack.c.0.s8 %v404
        %v406 = vlaneseq
        %v407 = vshrl.u32 %v406, 7
        %v408 = vsub.s32 %v405, %v407
        %v409 = vrot.slane %v395, %v408
        %v410 = vcombine.low %v354, %v370
        %v411 = vcombine.high %v354, %v370
        %v413 = vunpack.c.l.s4 1934713408
        %v414 = vunpack.c.0.s8 %v413
        %v415 = vlaneseq
        %v416 = vshrl.u32 %v415, 7
        %v417 = vsub.s32 %v414, %v416
        %v418 = vrot.slane %v410, %v417
        %v420 = vunpack.c.l.s4 1934713408
        %v421 = vunpack.c.0.s8 %v420
        %v422 = vlaneseq
        %v423 = vshrl.u32 %v422, 7
        %v424 = vsub.s32 %v421, %v423
        %v425 = vrot.slane %v411, %v424
        %v426 = vcombine.low %v361, %v377
        %v427 = vcombine.high %v361, %v377
        %v429 = vunpack.c.l.s4 1934713408
        %v430 = vunpack.c.0.s8 %v429
        %v431 = vlaneseq
        %v432 = vshrl.u32 %v431, 7
        %v433 = vsub.s32 %v430, %v432
        %v434 = vrot.slane %v426, %v433
        %v436 = vunpack.c.l.s4 1934713408
        %v437 = vunpack.c.0.s8 %v436
        %v438 = vlaneseq
        %v439 = vshrl.u32 %v438, 7
        %v440 = vsub.s32 %v437, %v439
        %v441 = vrot.slane %v427, %v440
        %v442 = vcombine.low %v386, %v402
        %v443 = vcombine.high %v386, %v402
        %v445 = vunpack.c.l.s4 1934713408
        %v446 = vunpack.c.0.s8 %v445
        %v447 = vlaneseq
        %v448 = vshrl.u32 %v447, 7
        %v449 = vsub.s32 %v446, %v448
        %v450 = vrot.slane %v442, %v449
        %v452 = vunpack.c.l.s4 1934713408
        %v453 = vunpack.c.0.s8 %v452
        %v454 = vlaneseq
        %v455 = vshrl.u32 %v454, 7
        %v456 = vsub.s32 %v453, %v455
        %v457 = vrot.slane %v443, %v456
        %v458 = vcombine.low %v393, %v409
        %v459 = vcombine.high %v393, %v409
        %v461 = vunpack.c.l.s4 1934713408
        %v462 = vunpack.c.0.s8 %v461
        %v463 = vlaneseq
        %v464 = vshrl.u32 %v463, 7
        %v465 = vsub.s32 %v462, %v464
        %v466 = vrot.slane %v458, %v465
        %v468 = vunpack.c.l.s4 1934713408
        %v469 = vunpack.c.0.s8 %v468
        %v470 = vlaneseq
        %v471 = vshrl.u32 %v470, 7
        %v472 = vsub.s32 %v469, %v471
        %v473 = vrot.slane %v459, %v472
        %v474 = vcombine.low %v418, %v450
        %v475 = vcombine.high %v418, %v450
        %v476 = vcombine.low %v425, %v457
        %v477 = vcombine.high %v425, %v457
        %v478 = vcombine.low %v434, %v466
        %v479 = vcombine.high %v434, %v466
        %v480 = vcombine.low %v441, %v473
        %v481 = vcombine.high %v441, %v473
        %vm482 = vcmask 15360
        %v483 = vsel %vm482, %v338, -inf
        %484 = vmax.xlane.f32.xlu0 %v483
        %v485 = vpop.xlane.xlu0 %484
        %v486 = vsel %vm482, %v339, -inf
        %487 = vmax.xlane.f32.xlu0 %v486
        %v488 = vpop.xlane.xlu0 %487
        %v489 = vsel %vm482, %v340, -inf
        %490 = vmax.xlane.f32.xlu0 %v489
        %v491 = vpop.xlane.xlu0 %490
        %v492 = vsel %vm482, %v341, -inf
        %493 = vmax.xlane.f32.xlu0 %v492
        %v494 = vpop.xlane.xlu0 %493
        %v495 = vsel %vm482, %v342, -inf
        %496 = vmax.xlane.f32.xlu0 %v495
        %v497 = vpop.xlane.xlu0 %496
        %v498 = vsel %vm482, %v343, -inf
        %499 = vmax.xlane.f32.xlu0 %v498
        %v500 = vpop.xlane.xlu0 %499
        %v501 = vsel %vm482, %v344, -inf
        %502 = vmax.xlane.f32.xlu0 %v501
        %v503 = vpop.xlane.xlu0 %502
        %v504 = vsel %vm482, %v345, -inf
        %505 = vmax.xlane.f32.xlu0 %v504
        %v506 = vpop.xlane.xlu0 %505
        %v507 = vsel %vm482, %v474, -inf
        %508 = vmax.xlane.f32.xlu0 %v507
        %v509 = vpop.xlane.xlu0 %508
        %v510 = vsel %vm482, %v475, -inf
        %511 = vmax.xlane.f32.xlu0 %v510
        %v512 = vpop.xlane.xlu0 %511
        %v513 = vsel %vm482, %v476, -inf
        %514 = vmax.xlane.f32.xlu0 %v513
        %v515 = vpop.xlane.xlu0 %514
        %v516 = vsel %vm482, %v477, -inf
        %517 = vmax.xlane.f32.xlu0 %v516
        %v518 = vpop.xlane.xlu0 %517
        %v519 = vsel %vm482, %v478, -inf
        %520 = vmax.xlane.f32.xlu0 %v519
        %v521 = vpop.xlane.xlu0 %520
        %v522 = vsel %vm482, %v479, -inf
        %523 = vmax.xlane.f32.xlu0 %v522
        %v524 = vpop.xlane.xlu0 %523
        %v525 = vsel %vm482, %v480, -inf
        %526 = vmax.xlane.f32.xlu0 %v525
        %v527 = vpop.xlane.xlu0 %526
        %v528 = vsel %vm482, %v481, -inf
        %529 = vmax.xlane.f32.xlu0 %v528
        %v530 = vpop.xlane.xlu0 %529
        %v547 = vlaneseq
        %v548 = vand.u32 %v547, 127
        %v549 = vlaneseq
        %v550 = vshrl.u32 %v549, 7
        %v551 = vsub.s32 %v548, %v550
        %v552 = vrot.slane %v485, %v551
        %v553 = vlaneseq
        %v554 = vshrl.u32 %v553, 7
        %v555 = vsub.s32 %v548, %v554
        %v556 = vrot.slane %v488, %v555
        %v557 = vlaneseq
        %v558 = vshrl.u32 %v557, 7
        %v559 = vsub.s32 %v548, %v558
        %v560 = vrot.slane %v491, %v559
        %v561 = vlaneseq
        %v562 = vshrl.u32 %v561, 7
        %v563 = vsub.s32 %v548, %v562
        %v564 = vrot.slane %v494, %v563
        %v565 = vlaneseq
        %v566 = vshrl.u32 %v565, 7
        %v567 = vsub.s32 %v548, %v566
        %v568 = vrot.slane %v497, %v567
        %v569 = vlaneseq
        %v570 = vshrl.u32 %v569, 7
        %v571 = vsub.s32 %v548, %v570
        %v572 = vrot.slane %v500, %v571
        %v573 = vlaneseq
        %v574 = vshrl.u32 %v573, 7
        %v575 = vsub.s32 %v548, %v574
        %v576 = vrot.slane %v503, %v575
        %v577 = vlaneseq
        %v578 = vshrl.u32 %v577, 7
        %v579 = vsub.s32 %v548, %v578
        %v580 = vrot.slane %v506, %v579
        %v581 = vlaneseq
        %v582 = vshrl.u32 %v581, 7
        %v583 = vsub.s32 %v548, %v582
        %v584 = vrot.slane %v509, %v583
        %v585 = vlaneseq
        %v586 = vshrl.u32 %v585, 7
        %v587 = vsub.s32 %v548, %v586
        %v588 = vrot.slane %v512, %v587
        %v589 = vlaneseq
        %v590 = vshrl.u32 %v589, 7
        %v591 = vsub.s32 %v548, %v590
        %v592 = vrot.slane %v515, %v591
        %v593 = vlaneseq
        %v594 = vshrl.u32 %v593, 7
        %v595 = vsub.s32 %v548, %v594
        %v596 = vrot.slane %v518, %v595
        %v597 = vlaneseq
        %v598 = vshrl.u32 %v597, 7
        %v599 = vsub.s32 %v548, %v598
        %v600 = vrot.slane %v521, %v599
        %v601 = vlaneseq
        %v602 = vshrl.u32 %v601, 7
        %v603 = vsub.s32 %v548, %v602
        %v604 = vrot.slane %v524, %v603
        %v605 = vlaneseq
        %v606 = vshrl.u32 %v605, 7
        %v607 = vsub.s32 %v548, %v606
        %v608 = vrot.slane %v527, %v607
        %v609 = vlaneseq
        %v610 = vshrl.u32 %v609, 7
        %v611 = vsub.s32 %v548, %v610
        %v612 = vrot.slane %v530, %v611
        %vm613 = vcmask 1041409
        %v614 = vsel %vm613, %v556, %v552
        %vm615 = vcmask 1042434
        %v616 = vsel %vm615, %v560, %v614
        %vm617 = vcmask 1043459
        %v618 = vsel %vm617, %v564, %v616
        %vm619 = vcmask 1044484
        %v620 = vsel %vm619, %v568, %v618
        %vm621 = vcmask 1045509
        %v622 = vsel %vm621, %v572, %v620
        %vm623 = vcmask 1046534
        %v624 = vsel %vm623, %v576, %v622
        %vm625 = vcmask 1047559
        %v626 = vsel %vm625, %v580, %v624
        %v627 = vsel %vm613, %v588, %v584
        %v628 = vsel %vm615, %v592, %v627
        %v629 = vsel %vm617, %v596, %v628
        %v630 = vsel %vm619, %v600, %v629
        %v631 = vsel %vm621, %v604, %v630
        %v632 = vsel %vm623, %v608, %v631
        %v633 = vsel %vm625, %v612, %v632
        %vm636 = vcmask 64512
        %637 = vst.msk [vmem:[%s151] sm:$0xff] %vm636, %v626
        %638 = vst.msk [vmem:[%s151 + $0x8] sm:$0xff] %vm636, %v633
        %s639 = sand.u32 %s68, 1
        %s640 = scalar_lea.sflag [#allocation4], %s639
        %s641 = sand.u32 %s68, 1
        %s642 = smul.addr %s641, 16
        %s643 = scalar_lea.vmem [#allocation5], %s642
        // Predicated region
        $region29: #{tpu_custom_call.1} parent=23 // pred_check
          %p644 = pneg %p78
        $region30: #{tpu_custom_call.1} parent=23 // pred_check_branch
          %646 = sbr.rel (%p644) target = $region32
        $region31: #{tpu_custom_call.1} parent=23 // pred_region
          %s647 = smul.u32 2, %s22
          %s649 = ssub.s32 256, 256
          %650 = vsyncadd %s640, %s649
          %s651 = sadd.s32 %s23, %s647
          %s652 = smul.addr %s651, 128
          %s653 = scalar_lea.hbm %s1, %s652
          %s654 = sshll.u32 %s643, 4
          %s655 = int_to_ptr.vmem [resolvable:$true] %s654
          %660 = dma.vmem_to_hbm [thread:$0]  %s655, 256, %s653, %s640, 128, 128, 8
        $region32: #{tpu_custom_call.1} parent=23 // pred_fallthru
          _
      $region24: #{tpu_custom_call.1} parent=5 // pred_fallthru
        _
      %p661 = scmp.le.s32.totalorder 2, %s13
      // Predicated region
      $region33: #{tpu_custom_call.1} parent=5 // pred_check
        %p662 = pneg %p661
      $region34: #{tpu_custom_call.1} parent=5 // pred_check_branch
        %664 = sbr.rel (%p662) target = $region36
      $region35: #{tpu_custom_call.1} parent=5 // pred_region
        %s665 = ssub.s32 %s13, 2
        // Predicated region
        $region37: #{tpu_custom_call.1} parent=35 // pred_check
          %p666 = pneg %p84
        $region38: #{tpu_custom_call.1} parent=35 // pred_check_branch
          %668 = sbr.rel (%p666) target = $region40
        $region39: #{tpu_custom_call.1} parent=35 // pred_region
          %s669 = sand.u32 %s69, 1
          %s670 = scalar_lea.sflag [#allocation4], %s669
          %s671 = sand.u32 %s69, 1
          %s672 = smul.addr %s671, 16
          %s673 = scalar_lea.vmem [#allocation5], %s672
          %674 = dma.done %s670, 256
        $region40: #{tpu_custom_call.1} parent=35 // pred_fallthru
          _
      $region36: #{tpu_custom_call.1} parent=5 // pred_fallthru
        _
    $region6: #{tpu_custom_call.1} parent=1 // loop_footer
      %s17 = sadd.s32 1, %s13
    $region7: #{tpu_custom_call.1} parent=1 // loop_footer_branch
      %12 = sbr.rel target = $region3
    $region8: #{tpu_custom_call.1} parent=1 // loop_exit
      _
    %675 = vsyncpa [#allocation3], 1
    %s676 = scalar_lea.sflag [#allocation3], 1
    %677 = vsyncpa %s676, 1
    %678 = vsyncpa [#allocation4], 1
    %s679 = scalar_lea.sflag [#allocation4], 1
    %680 = vsyncpa %s679, 1

</llo_original>
